<compile_context>
chip_gen: v7x
topology: tpu7x:2x2x1
jax: 0.10.0
libtpu: 0.0.40
codegen_flags: <defaults>
</compile_context>

<pallas_src>
import jax
import jax.numpy as jnp
from jax import lax
from jax.experimental import pallas as pl
from jax.experimental.pallas import tpu as pltpu


def _embedding_kernel(ids_ref, table_ref, out_ref):
    """One tile of the embedding gather.

    ids_ref:   VMEM (rows, pack) int32 — `pack` consecutive token ids per row
    table_ref: VMEM (V, E)              — full table, resident (constant index)
    out_ref:   VMEM (rows, pack * E)    — lane-dense packed output rows
    """
    rows, pack = ids_ref.shape
    vocab, _ = table_ref.shape

    ids = ids_ref[...]                                     # (rows, pack) int32
    table = table_ref[...]                                 # (V, E)
    iota = lax.broadcasted_iota(jnp.int32, (rows, vocab), 1)

    cols = []
    for j in range(pack):
        # one-hot row selector for token group j; lives only in vregs
        onehot = (ids[:, j:j + 1] == iota).astype(table.dtype)      # (rows, V)
        cols.append(jnp.dot(onehot, table,
                            preferred_element_type=jnp.float32))    # (rows, E)

    y = cols[0] if pack == 1 else jnp.concatenate(cols, axis=-1)    # (rows, pack*E)
    out_ref[...] = y.astype(out_ref.dtype)


def _round_up(x, m):
    return ((x + m - 1) // m) * m


def embedding_forward(x, table, *, tile=512):
    """x: (B, S) integer token ids; table: (V, E) -> (B, S, E)."""
    B, S = x.shape
    V, E = table.shape
    n_tok = B * S

    # torch.nn.Embedding raises on out-of-range ids; we clamp instead (the
    # one-hot would otherwise silently produce a zero row).
    ids = jnp.clip(x.reshape(n_tok).astype(jnp.int32), 0, V - 1)

    # Lane-dense packing: `pack` consecutive tokens per 128-lane output row.
    pack = 128 // E if (E < 128 and 128 % E == 0) else 1
    unit = 8 * pack                       # keeps rows-per-block a multiple of 8
    tile = max(unit, min(_round_up(tile, unit), _round_up(n_tok, unit)))
    n_pad = _round_up(n_tok, tile)
    if n_pad != n_tok:
        ids = jnp.pad(ids, (0, n_pad - n_tok))   # pad rows dropped after the call

    rows_blk = tile // pack
    n_rows = n_pad // pack
    ids2 = ids.reshape(n_rows, pack)             # free row-major reshape

    # VMEM budget: table (double-buffered by the pipeliner) + out/ids blocks.
    itemsize = jnp.dtype(table.dtype).itemsize
    vmem_need = (2 * V * E * itemsize
                 + 2 * rows_blk * pack * E * itemsize
                 + 2 * rows_blk * pack * 4
                 + (2 << 20))
    cp_kwargs = dict(dimension_semantics=("parallel",))
    if vmem_need > (16 << 20):
        cp_kwargs["vmem_limit_bytes"] = int(vmem_need)

    out = pl.pallas_call(
        _embedding_kernel,
        out_shape=jax.ShapeDtypeStruct((n_rows, pack * E), table.dtype),
        grid=(n_pad // tile,),
        in_specs=[
            pl.BlockSpec((rows_blk, pack), lambda i: (i, 0)),
            # full table resident in VMEM; constant block index => single DMA
            pl.BlockSpec((V, E), lambda i: (0, 0)),
        ],
        out_specs=pl.BlockSpec((rows_blk, pack * E), lambda i: (i, 0)),
        compiler_params=pltpu.CompilerParams(**cp_kwargs),
    )(ids2, table)

    # (n_rows, pack*E) row-major == (n_pad, E) row-major: free metadata reshape.
    return out.reshape(n_pad, E)[:n_tok].reshape(B, S, E)


if __name__ == "__main__":
    # Small shapes consistent with the module: vocab=128, emb_dim=32, batch=2, seq=8
    vocab_size, emb_dim = 128, 32
    batch, seq = 2, 8

    key = jax.random.PRNGKey(0)
    k_ids, k_w = jax.random.split(key)

    # Deterministic "parameters": nn.Embedding default init ~ N(0, 1)
    table = jax.random.normal(k_w, (vocab_size, emb_dim), dtype=jnp.float32)
    x = jax.random.randint(k_ids, (batch, seq), 0, vocab_size, dtype=jnp.int32)

    out = embedding_forward(x, table)
    out = jax.block_until_ready(out)

    # Reference: plain JAX gather (== torch embedding lookup semantics)
    ref = table[x]
    assert out.shape == (batch, seq, emb_dim)
    assert jnp.allclose(out, ref, atol=1e-6), "mismatch vs reference gather"

    print("KERNEL_OK")
</pallas_src>

<mosaic_0001>
module attributes {stable_mosaic.version = 11 : i64} {
  func.func @_embedding_kernel(%arg0: i32, %arg1: memref<8x4xi32, #tpu.memory_space<vmem>>, %arg2: memref<128x32xf32, #tpu.memory_space<vmem>>, %arg3: memref<8x128xf32, #tpu.memory_space<vmem>>) attributes {dimension_semantics = [#tpu.dimension_semantics<parallel>], iteration_bounds = array<i64: 1>, scalar_prefetch = 0 : i64, scratch_operands = 0 : i64, tpu.core_type = #tpu.core_type<tc>, window_params = [{transform_indices = @transform_0, window_bounds = array<i64: 8, 4>}, {pipeline_mode = #tpu.pipeline_mode<synchronous>, transform_indices = @transform_1, window_bounds = array<i64: 128, 32>}, {transform_indices = @transform_2, window_bounds = array<i64: 8, 128>}]} {
    %c0 = arith.constant 0 : index
    %c0_0 = arith.constant 0 : index
    %0 = vector.load %arg1[%c0, %c0_0] : memref<8x4xi32, #tpu.memory_space<vmem>>, vector<8x4xi32>
    %c0_1 = arith.constant 0 : index
    %c0_2 = arith.constant 0 : index
    %1 = vector.load %arg2[%c0_1, %c0_2] : memref<128x32xf32, #tpu.memory_space<vmem>>, vector<128x32xf32>
    %2 = tpu.iota {dimensions = array<i32: 1>} : vector<8x128xi32>
    %3 = vector.extract_strided_slice %0 {offsets = [0, 0], sizes = [8, 1], strides = [1, 1]} : vector<8x4xi32> to vector<8x1xi32>
    %4 = vector.broadcast %3 : vector<8x1xi32> to vector<8x128xi32>
    %5 = arith.cmpi eq, %4, %2 : vector<8x128xi32>
    %6 = arith.extui %5 : vector<8x128xi1> to vector<8x128xi32>
    %7 = arith.sitofp %6 : vector<8x128xi32> to vector<8x128xf32>
    %cst = arith.constant dense<0.000000e+00> : vector<8x32xf32>
    %8 = tpu.matmul %7, %1, %cst {dimension_numbers = #tpu.dot_dimension_numbers<[1], [0], [0], [1], [0, 0, 1, 1], [], []>} : vector<8x128xf32>, vector<128x32xf32>, vector<8x32xf32> -> vector<8x32xf32>
    %9 = vector.extract_strided_slice %0 {offsets = [0, 1], sizes = [8, 1], strides = [1, 1]} : vector<8x4xi32> to vector<8x1xi32>
    %10 = vector.broadcast %9 : vector<8x1xi32> to vector<8x128xi32>
    %11 = arith.cmpi eq, %10, %2 : vector<8x128xi32>
    %12 = arith.extui %11 : vector<8x128xi1> to vector<8x128xi32>
    %13 = arith.sitofp %12 : vector<8x128xi32> to vector<8x128xf32>
    %cst_3 = arith.constant dense<0.000000e+00> : vector<8x32xf32>
    %14 = tpu.matmul %13, %1, %cst_3 {dimension_numbers = #tpu.dot_dimension_numbers<[1], [0], [0], [1], [0, 0, 1, 1], [], []>} : vector<8x128xf32>, vector<128x32xf32>, vector<8x32xf32> -> vector<8x32xf32>
    %15 = vector.extract_strided_slice %0 {offsets = [0, 2], sizes = [8, 1], strides = [1, 1]} : vector<8x4xi32> to vector<8x1xi32>
    %16 = vector.broadcast %15 : vector<8x1xi32> to vector<8x128xi32>
    %17 = arith.cmpi eq, %16, %2 : vector<8x128xi32>
    %18 = arith.extui %17 : vector<8x128xi1> to vector<8x128xi32>
    %19 = arith.sitofp %18 : vector<8x128xi32> to vector<8x128xf32>
    %cst_4 = arith.constant dense<0.000000e+00> : vector<8x32xf32>
    %20 = tpu.matmul %19, %1, %cst_4 {dimension_numbers = #tpu.dot_dimension_numbers<[1], [0], [0], [1], [0, 0, 1, 1], [], []>} : vector<8x128xf32>, vector<128x32xf32>, vector<8x32xf32> -> vector<8x32xf32>
    %21 = vector.extract_strided_slice %0 {offsets = [0, 3], sizes = [8, 1], strides = [1, 1]} : vector<8x4xi32> to vector<8x1xi32>
    %22 = vector.broadcast %21 : vector<8x1xi32> to vector<8x128xi32>
    %23 = arith.cmpi eq, %22, %2 : vector<8x128xi32>
    %24 = arith.extui %23 : vector<8x128xi1> to vector<8x128xi32>
    %25 = arith.sitofp %24 : vector<8x128xi32> to vector<8x128xf32>
    %cst_5 = arith.constant dense<0.000000e+00> : vector<8x32xf32>
    %26 = tpu.matmul %25, %1, %cst_5 {dimension_numbers = #tpu.dot_dimension_numbers<[1], [0], [0], [1], [0, 0, 1, 1], [], []>} : vector<8x128xf32>, vector<128x32xf32>, vector<8x32xf32> -> vector<8x32xf32>
    %27 = tpu.concatenate %8, %14, %20, %26 in 1 : vector<8x32xf32>, vector<8x32xf32>, vector<8x32xf32>, vector<8x32xf32> -> vector<8x128xf32>
    %c0_6 = arith.constant 0 : index
    %c0_7 = arith.constant 0 : index
    %28 = vector.load %arg3[%c0_6, %c0_7] : memref<8x128xf32, #tpu.memory_space<vmem>>, vector<8x128xf32>
    tpu.vector_store %arg3[%c0_6, %c0_7], %27 {strides = array<i32>} : memref<8x128xf32, #tpu.memory_space<vmem>>, vector<8x128xf32>,
    return
  }
  func.func @transform_0(%arg0: i32) -> (i32, i32) {
    %c0_i32 = arith.constant 0 : i32
    %c0_i32_0 = arith.constant 0 : i32
    return %arg0, %c0_i32 : i32, i32
  }
  func.func @transform_1(%arg0: i32) -> (i32, i32) {
    %c0_i32 = arith.constant 0 : i32
    %c0_i32_0 = arith.constant 0 : i32
    %c0_i32_1 = arith.constant 0 : i32
    return %c0_i32, %c0_i32_0 : i32, i32
  }
  func.func @transform_2(%arg0: i32) -> (i32, i32) {
    %c0_i32 = arith.constant 0 : i32
    %c0_i32_0 = arith.constant 0 : i32
    return %arg0, %c0_i32 : i32, i32
  }
}

</mosaic_0001>

<llo_original>
// kernel: tpu_custom_call.1
$region0: #{tpu_custom_call.1}
  #allocation0 [shape = 'u32[]', space=smem, size = 0x4, offset = 0x4, fixed_abs, tag = 'smem constant byte address 0x4 - core index']
  #allocation1 [shape = 'u32[144,128]{1,0:T(1,128)}', space=vmem, size = 0x12000, scoped, tag = 'internal scratch']
  %s0 = inlined_call_operand.vmem [shape: s32[8,4], index: 0, kind: input, shape index: {}]
  %s1 = inlined_call_operand.vmem [shape: f32[128,32], index: 1, kind: input, shape index: {}]
  %s2 = inlined_call_operand.hbm [shape: f32[8,128], index: 2, kind: output, shape index: {}]
  %s3 = sld [smem:[#allocation0]]
  $region18: #{tpu_custom_call.1} parent=0
    _
  %s5 = ssub.s32 1, %s3
  %s6 = scalar_select 0, %s5, %s3
  $region1: #{tpu_custom_call.1} parent=0
    #allocation2 [shape = 'u8[4096]{0}', space=vmem, size = 0x1000, scoped, tag = 'output window, operand 0, single buffered']
    #allocation3 [shape = 's32[1]{0}', space=sflag, size = 0x4, scoped, tag = 'scoped memory for tpu_custom_call.1']
    %7 = vsyncpa [#allocation3], 0
    // Predicated region
    $region2: #{tpu_custom_call.1} parent=1 // pred_check
      _
    $region3: #{tpu_custom_call.1} parent=1 // pred_check_branch
      %9 = sbr.rel (0) target = $region5
    $region4: #{tpu_custom_call.1} parent=1 // pred_region
      _
    $region5: #{tpu_custom_call.1} parent=1 // pred_fallthru
      _
    // Predicated region
    $region6: #{tpu_custom_call.1} parent=1 // pred_check
      _
    $region7: #{tpu_custom_call.1} parent=1 // pred_check_branch
      %11 = sbr.rel (0) target = $region9
    $region8: #{tpu_custom_call.1} parent=1 // pred_region
      _
    $region9: #{tpu_custom_call.1} parent=1 // pred_fallthru
      _
    %v12 = vld [vmem:[%s0] sm:$0xff]
    %v13 = vld [vmem:[%s1] sm:$0xff]
    %v14 = vld [vmem:[%s1 + $0x8] sm:$0xff]
    %v15 = vld [vmem:[%s1 + $0x10] sm:$0xff]
    %v16 = vld [vmem:[%s1 + $0x18] sm:$0xff]
    %v17 = vld [vmem:[%s1 + $0x20] sm:$0xff]
    %v18 = vld [vmem:[%s1 + $0x28] sm:$0xff]
    %v19 = vld [vmem:[%s1 + $0x30] sm:$0xff]
    %v20 = vld [vmem:[%s1 + $0x38] sm:$0xff]
    %v21 = vld [vmem:[%s1 + $0x40] sm:$0xff]
    %v22 = vld [vmem:[%s1 + $0x48] sm:$0xff]
    %v23 = vld [vmem:[%s1 + $0x50] sm:$0xff]
    %v24 = vld [vmem:[%s1 + $0x58] sm:$0xff]
    %v25 = vld [vmem:[%s1 + $0x60] sm:$0xff]
    %v26 = vld [vmem:[%s1 + $0x68] sm:$0xff]
    %v27 = vld [vmem:[%s1 + $0x70] sm:$0xff]
    %v28 = vld [vmem:[%s1 + $0x78] sm:$0xff]
    %v29 = vlaneseq
    %v30 = vand.u32 %v29, 127
    %31 = vset.pattern.permute.xlu0 0
    %32 = vperm.xlu0 %31, %v12
    %v33 = vpop.permute.xlu0 %32
    %vm34 = vcmp.eq.s32.totalorder %v33, %v30
    %v35 = vsel %vm34, 1, 0
    %v36 = vcvt.s32.f32 %v35
    %37 = vmatprep.subr.mxu0 0.0
    %38 = vmatpush1.msra.mxu0 %v13
    %39 = vmatprep.subr.mxu0 0.0
    %40 = vmatpush1.msra.mxu0 %v14
    %41 = vmatprep.subr.mxu0 0.0
    %42 = vmatpush1.msra.mxu0 %v15
    %43 = vmatprep.subr.mxu0 0.0
    %44 = vmatpush1.msra.mxu0 %v16
    %45 = vmatprep.subr.mxu0 0.0
    %46 = vmatpush1.msra.mxu0 %v17
    %47 = vmatprep.subr.mxu0 0.0
    %48 = vmatpush1.msra.mxu0 %v18
    %49 = vmatprep.subr.mxu0 0.0
    %50 = vmatpush1.msra.mxu0 %v19
    %51 = vmatprep.subr.mxu0 0.0
    %52 = vmatpush1.msra.mxu0 %v20
    %53 = vmatprep.subr.mxu0 0.0
    %54 = vmatpush1.msra.mxu0 %v21
    %55 = vmatprep.subr.mxu0 0.0
    %56 = vmatpush1.msra.mxu0 %v22
    %57 = vmatprep.subr.mxu0 0.0
    %58 = vmatpush1.msra.mxu0 %v23
    %59 = vmatprep.subr.mxu0 0.0
    %60 = vmatpush1.msra.mxu0 %v24
    %61 = vmatprep.subr.mxu0 0.0
    %62 = vmatpush1.msra.mxu0 %v25
    %63 = vmatprep.subr.mxu0 0.0
    %64 = vmatpush1.msra.mxu0 %v26
    %65 = vmatprep.subr.mxu0 0.0
    %66 = vmatpush1.msra.mxu0 %v27
    %67 = vmatprep.subr.mxu0 0.0
    %68 = vmatpush1.msra.mxu0 %v28
    %69 = vmatprep.subr.mxu0 0.0
    %70 = vmatpush1.msra.mxu0 0.0
    %71 = vmatprep.subr.mxu0 0.0
    %72 = vmatpush1.msra.mxu0 0.0
    %73 = vmatprep.subr.mxu0 0.0
    %74 = vmatpush1.msra.mxu0 0.0
    %75 = vmatprep.subr.mxu0 0.0
    %76 = vmatpush1.msra.mxu0 0.0
    %77 = vmatprep.subr.mxu0 0.0
    %78 = vmatpush1.msra.mxu0 0.0
    %79 = vmatprep.subr.mxu0 0.0
    %80 = vmatpush1.msra.mxu0 0.0
    %81 = vmatprep.subr.mxu0 0.0
    %82 = vmatpush1.msra.mxu0 0.0
    %83 = vmatprep.subr.mxu0 0.0
    %84 = vmatpush1.msra.mxu0 0.0
    %85 = vmatprep.subr.mxu0 0.0
    %86 = vmatpush1.msra.mxu0 0.0
    %87 = vmatprep.subr.mxu0 0.0
    %88 = vmatpush1.msra.mxu0 0.0
    %89 = vmatprep.subr.mxu0 0.0
    %90 = vmatpush1.msra.mxu0 0.0
    %91 = vmatprep.subr.mxu0 0.0
    %92 = vmatpush1.msra.mxu0 0.0
    %93 = vmatprep.subr.mxu0 0.0
    %94 = vmatpush1.msra.mxu0 0.0
    %95 = vmatprep.subr.mxu0 0.0
    %96 = vmatpush1.msra.mxu0 0.0
    %97 = vmatprep.subr.mxu0 0.0
    %98 = vmatpush1.msra.mxu0 0.0
    %99 = vmatprep.subr.mxu0 0.0
    %100 = vmatpush1.msra.mxu0 0.0
    %101 = vmatprep.mubr.f32.mxu0 0.0
    %102 = vmatmul.mubr.f32.gmra.mrb[0].mxu0 %v36
    %v103 = vpop.f32.mrb[0].mxu0
    %v104 = vadd.f32 0.0, %v103
    %v105 = vpop.f32.mrb[0].mxu0
    %106 = vdwg.mxu0
    %107 = vset.pattern.permute.xlu0 1
    %108 = vperm.xlu0 %107, %v12
    %v109 = vpop.permute.xlu0 %108
    %vm110 = vcmp.eq.s32.totalorder %v109, %v30
    %v111 = vsel %vm110, 1, 0
    %v112 = vcvt.s32.f32 %v111
    %113 = vmatprep.subr.mxu0 0.0
    %114 = vmatpush1.msra.mxu0 %v13
    %115 = vmatprep.subr.mxu0 0.0
    %116 = vmatpush1.msra.mxu0 %v14
    %117 = vmatprep.subr.mxu0 0.0
    %118 = vmatpush1.msra.mxu0 %v15
    %119 = vmatprep.subr.mxu0 0.0
    %120 = vmatpush1.msra.mxu0 %v16
    %121 = vmatprep.subr.mxu0 0.0
    %122 = vmatpush1.msra.mxu0 %v17
    %123 = vmatprep.subr.mxu0 0.0
    %124 = vmatpush1.msra.mxu0 %v18
    %125 = vmatprep.subr.mxu0 0.0
    %126 = vmatpush1.msra.mxu0 %v19
    %127 = vmatprep.subr.mxu0 0.0
    %128 = vmatpush1.msra.mxu0 %v20
    %129 = vmatprep.subr.mxu0 0.0
    %130 = vmatpush1.msra.mxu0 %v21
    %131 = vmatprep.subr.mxu0 0.0
    %132 = vmatpush1.msra.mxu0 %v22
    %133 = vmatprep.subr.mxu0 0.0
    %134 = vmatpush1.msra.mxu0 %v23
    %135 = vmatprep.subr.mxu0 0.0
    %136 = vmatpush1.msra.mxu0 %v24
    %137 = vmatprep.subr.mxu0 0.0
    %138 = vmatpush1.msra.mxu0 %v25
    %139 = vmatprep.subr.mxu0 0.0
    %140 = vmatpush1.msra.mxu0 %v26
    %141 = vmatprep.subr.mxu0 0.0
    %142 = vmatpush1.msra.mxu0 %v27
    %143 = vmatprep.subr.mxu0 0.0
    %144 = vmatpush1.msra.mxu0 %v28
    %145 = vmatprep.subr.mxu0 0.0
    %146 = vmatpush1.msra.mxu0 0.0
    %147 = vmatprep.subr.mxu0 0.0
    %148 = vmatpush1.msra.mxu0 0.0
    %149 = vmatprep.subr.mxu0 0.0
    %150 = vmatpush1.msra.mxu0 0.0
    %151 = vmatprep.subr.mxu0 0.0
    %152 = vmatpush1.msra.mxu0 0.0
    %153 = vmatprep.subr.mxu0 0.0
    %154 = vmatpush1.msra.mxu0 0.0
    %155 = vmatprep.subr.mxu0 0.0
    %156 = vmatpush1.msra.mxu0 0.0
    %157 = vmatprep.subr.mxu0 0.0
    %158 = vmatpush1.msra.mxu0 0.0
    %159 = vmatprep.subr.mxu0 0.0
    %160 = vmatpush1.msra.mxu0 0.0
    %161 = vmatprep.subr.mxu0 0.0
    %162 = vmatpush1.msra.mxu0 0.0
    %163 = vmatprep.subr.mxu0 0.0
    %164 = vmatpush1.msra.mxu0 0.0
    %165 = vmatprep.subr.mxu0 0.0
    %166 = vmatpush1.msra.mxu0 0.0
    %167 = vmatprep.subr.mxu0 0.0
    %168 = vmatpush1.msra.mxu0 0.0
    %169 = vmatprep.subr.mxu0 0.0
    %170 = vmatpush1.msra.mxu0 0.0
    %171 = vmatprep.subr.mxu0 0.0
    %172 = vmatpush1.msra.mxu0 0.0
    %173 = vmatprep.subr.mxu0 0.0
    %174 = vmatpush1.msra.mxu0 0.0
    %175 = vmatprep.subr.mxu0 0.0
    %176 = vmatpush1.msra.mxu0 0.0
    %177 = vmatprep.mubr.f32.mxu0 0.0
    %178 = vmatmul.mubr.f32.gmra.mrb[0].mxu0 %v112
    %v179 = vpop.f32.mrb[0].mxu0
    %v180 = vadd.f32 0.0, %v179
    %v181 = vpop.f32.mrb[0].mxu0
    %182 = vdwg.mxu0
    %183 = vset.pattern.permute.xlu0 2
    %184 = vperm.xlu0 %183, %v12
    %v185 = vpop.permute.xlu0 %184
    %vm186 = vcmp.eq.s32.totalorder %v185, %v30
    %v187 = vsel %vm186, 1, 0
    %v188 = vcvt.s32.f32 %v187
    %189 = vmatprep.subr.mxu0 0.0
    %190 = vmatpush1.msra.mxu0 %v13
    %191 = vmatprep.subr.mxu0 0.0
    %192 = vmatpush1.msra.mxu0 %v14
    %193 = vmatprep.subr.mxu0 0.0
    %194 = vmatpush1.msra.mxu0 %v15
    %195 = vmatprep.subr.mxu0 0.0
    %196 = vmatpush1.msra.mxu0 %v16
    %197 = vmatprep.subr.mxu0 0.0
    %198 = vmatpush1.msra.mxu0 %v17
    %199 = vmatprep.subr.mxu0 0.0
    %200 = vmatpush1.msra.mxu0 %v18
    %201 = vmatprep.subr.mxu0 0.0
    %202 = vmatpush1.msra.mxu0 %v19
    %203 = vmatprep.subr.mxu0 0.0
    %204 = vmatpush1.msra.mxu0 %v20
    %205 = vmatprep.subr.mxu0 0.0
    %206 = vmatpush1.msra.mxu0 %v21
    %207 = vmatprep.subr.mxu0 0.0
    %208 = vmatpush1.msra.mxu0 %v22
    %209 = vmatprep.subr.mxu0 0.0
    %210 = vmatpush1.msra.mxu0 %v23
    %211 = vmatprep.subr.mxu0 0.0
    %212 = vmatpush1.msra.mxu0 %v24
    %213 = vmatprep.subr.mxu0 0.0
    %214 = vmatpush1.msra.mxu0 %v25
    %215 = vmatprep.subr.mxu0 0.0
    %216 = vmatpush1.msra.mxu0 %v26
    %217 = vmatprep.subr.mxu0 0.0
    %218 = vmatpush1.msra.mxu0 %v27
    %219 = vmatprep.subr.mxu0 0.0
    %220 = vmatpush1.msra.mxu0 %v28
    %221 = vmatprep.subr.mxu0 0.0
    %222 = vmatpush1.msra.mxu0 0.0
    %223 = vmatprep.subr.mxu0 0.0
    %224 = vmatpush1.msra.mxu0 0.0
    %225 = vmatprep.subr.mxu0 0.0
    %226 = vmatpush1.msra.mxu0 0.0
    %227 = vmatprep.subr.mxu0 0.0
    %228 = vmatpush1.msra.mxu0 0.0
    %229 = vmatprep.subr.mxu0 0.0
    %230 = vmatpush1.msra.mxu0 0.0
    %231 = vmatprep.subr.mxu0 0.0
    %232 = vmatpush1.msra.mxu0 0.0
    %233 = vmatprep.subr.mxu0 0.0
    %234 = vmatpush1.msra.mxu0 0.0
    %235 = vmatprep.subr.mxu0 0.0
    %236 = vmatpush1.msra.mxu0 0.0
    %237 = vmatprep.subr.mxu0 0.0
    %238 = vmatpush1.msra.mxu0 0.0
    %239 = vmatprep.subr.mxu0 0.0
    %240 = vmatpush1.msra.mxu0 0.0
    %241 = vmatprep.subr.mxu0 0.0
    %242 = vmatpush1.msra.mxu0 0.0
    %243 = vmatprep.subr.mxu0 0.0
    %244 = vmatpush1.msra.mxu0 0.0
    %245 = vmatprep.subr.mxu0 0.0
    %246 = vmatpush1.msra.mxu0 0.0
    %247 = vmatprep.subr.mxu0 0.0
    %248 = vmatpush1.msra.mxu0 0.0
    %249 = vmatprep.subr.mxu0 0.0
    %250 = vmatpush1.msra.mxu0 0.0
    %251 = vmatprep.subr.mxu0 0.0
    %252 = vmatpush1.msra.mxu0 0.0
    %253 = vmatprep.mubr.f32.mxu0 0.0
    %254 = vmatmul.mubr.f32.gmra.mrb[0].mxu0 %v188
    %v255 = vpop.f32.mrb[0].mxu0
    %v256 = vadd.f32 0.0, %v255
    %v257 = vpop.f32.mrb[0].mxu0
    %258 = vdwg.mxu0
    %259 = vset.pattern.permute.xlu0 3
    %260 = vperm.xlu0 %259, %v12
    %v261 = vpop.permute.xlu0 %260
    %vm262 = vcmp.eq.s32.totalorder %v261, %v30
    %v263 = vsel %vm262, 1, 0
    %v264 = vcvt.s32.f32 %v263
    %265 = vmatprep.subr.mxu0 0.0
    %266 = vmatpush1.msra.mxu0 %v13
    %267 = vmatprep.subr.mxu0 0.0
    %268 = vmatpush1.msra.mxu0 %v14
    %269 = vmatprep.subr.mxu0 0.0
    %270 = vmatpush1.msra.mxu0 %v15
    %271 = vmatprep.subr.mxu0 0.0
    %272 = vmatpush1.msra.mxu0 %v16
    %273 = vmatprep.subr.mxu0 0.0
    %274 = vmatpush1.msra.mxu0 %v17
    %275 = vmatprep.subr.mxu0 0.0
    %276 = vmatpush1.msra.mxu0 %v18
    %277 = vmatprep.subr.mxu0 0.0
    %278 = vmatpush1.msra.mxu0 %v19
    %279 = vmatprep.subr.mxu0 0.0
    %280 = vmatpush1.msra.mxu0 %v20
    %281 = vmatprep.subr.mxu0 0.0
    %282 = vmatpush1.msra.mxu0 %v21
    %283 = vmatprep.subr.mxu0 0.0
    %284 = vmatpush1.msra.mxu0 %v22
    %285 = vmatprep.subr.mxu0 0.0
    %286 = vmatpush1.msra.mxu0 %v23
    %287 = vmatprep.subr.mxu0 0.0
    %288 = vmatpush1.msra.mxu0 %v24
    %289 = vmatprep.subr.mxu0 0.0
    %290 = vmatpush1.msra.mxu0 %v25
    %291 = vmatprep.subr.mxu0 0.0
    %292 = vmatpush1.msra.mxu0 %v26
    %293 = vmatprep.subr.mxu0 0.0
    %294 = vmatpush1.msra.mxu0 %v27
    %295 = vmatprep.subr.mxu0 0.0
    %296 = vmatpush1.msra.mxu0 %v28
    %297 = vmatprep.subr.mxu0 0.0
    %298 = vmatpush1.msra.mxu0 0.0
    %299 = vmatprep.subr.mxu0 0.0
    %300 = vmatpush1.msra.mxu0 0.0
    %301 = vmatprep.subr.mxu0 0.0
    %302 = vmatpush1.msra.mxu0 0.0
    %303 = vmatprep.subr.mxu0 0.0
    %304 = vmatpush1.msra.mxu0 0.0
    %305 = vmatprep.subr.mxu0 0.0
    %306 = vmatpush1.msra.mxu0 0.0
    %307 = vmatprep.subr.mxu0 0.0
    %308 = vmatpush1.msra.mxu0 0.0
    %309 = vmatprep.subr.mxu0 0.0
    %310 = vmatpush1.msra.mxu0 0.0
    %311 = vmatprep.subr.mxu0 0.0
    %312 = vmatpush1.msra.mxu0 0.0
    %313 = vmatprep.subr.mxu0 0.0
    %314 = vmatpush1.msra.mxu0 0.0
    %315 = vmatprep.subr.mxu0 0.0
    %316 = vmatpush1.msra.mxu0 0.0
    %317 = vmatprep.subr.mxu0 0.0
    %318 = vmatpush1.msra.mxu0 0.0
    %319 = vmatprep.subr.mxu0 0.0
    %320 = vmatpush1.msra.mxu0 0.0
    %321 = vmatprep.subr.mxu0 0.0
    %322 = vmatpush1.msra.mxu0 0.0
    %323 = vmatprep.subr.mxu0 0.0
    %324 = vmatpush1.msra.mxu0 0.0
    %325 = vmatprep.subr.mxu0 0.0
    %326 = vmatpush1.msra.mxu0 0.0
    %327 = vmatprep.subr.mxu0 0.0
    %328 = vmatpush1.msra.mxu0 0.0
    %329 = vmatprep.mubr.f32.mxu0 0.0
    %330 = vmatmul.mubr.f32.gmra.mrb[0].mxu0 %v264
    %v331 = vpop.f32.mrb[0].mxu0
    %v332 = vadd.f32 0.0, %v331
    %v333 = vpop.f32.mrb[0].mxu0
    %334 = vdwg.mxu0
    %336 = vrot.lane.b32.xlu0 %v180, 32
    %v337 = vpop.permute.xlu0 %336
    %340 = vrot.lane.b32.xlu0 %v256, 64
    %v341 = vpop.permute.xlu0 %340
    %344 = vrot.lane.b32.xlu0 %v332, 96
    %v345 = vpop.permute.xlu0 %344
    %vm347 = vcmask 261120
    %v348 = vsel %vm347, %v104, %v337
    %vm349 = vcmask 523264
    %v350 = vsel %vm349, %v348, %v341
    %vm351 = vcmask 785408
    %v352 = vsel %vm351, %v350, %v345
    %353 = vst [vmem:[#allocation2] sm:$0xff] %v352
    // Predicated region
    $region10: #{tpu_custom_call.1} parent=1 // pred_check
      _
    $region11: #{tpu_custom_call.1} parent=1 // pred_check_branch
      %355 = sbr.rel (0) target = $region13
    $region12: #{tpu_custom_call.1} parent=1 // pred_region
      %s357 = ssub.s32 128, 128
      %358 = vsyncadd [#allocation3], %s357
      %s360 = sshll.u32 [#allocation2], 4
      %s361 = int_to_ptr.vmem [resolvable:$true] %s360
      %363 = dma.vmem_to_hbm [thread:$0]  %s361, 128, %s2, [#allocation3]
    $region13: #{tpu_custom_call.1} parent=1 // pred_fallthru
      _
    // Predicated region
    $region14: #{tpu_custom_call.1} parent=1 // pred_check
      _
    $region15: #{tpu_custom_call.1} parent=1 // pred_check_branch
      %365 = sbr.rel (0) target = $region17
    $region16: #{tpu_custom_call.1} parent=1 // pred_region
      %366 = dma.done [#allocation3], 128
    $region17: #{tpu_custom_call.1} parent=1 // pred_fallthru
      _
    %367 = vsyncpa [#allocation3], 1

</llo_original>
